<compile_context>
chip_gen: v6e
topology: v6e:2x2x1
jax: 0.10.0
libtpu: 0.0.40
codegen_flags: <defaults>
</compile_context>

<pallas_src>
import functools

import jax
import jax.numpy as jnp
from jax import lax
from jax.experimental import pallas as pl
from jax.experimental.pallas import tpu as pltpu


def _ce_loss_kernel(logits_ref, labels_ref, wi_ref, num_ref, den_ref, *, n_rows):
    # logits_ref: (TILE_N, C) native dtype, VMEM
    # labels_ref: (TILE_N, 1) int32,        VMEM
    # wi_ref:     (TILE_N, 1) float32,      VMEM  (per-sample weight)
    # num_ref:    (1, 1) float32, SMEM  (per-tile weighted NLL sum)
    # den_ref:    (1, 1) float32, SMEM  (per-tile weight sum)
    x = logits_ref[...].astype(jnp.float32)          # (TILE_N, C)
    labels = labels_ref[...]                         # (TILE_N, 1)
    w_i = wi_ref[...]                                # (TILE_N, 1)

    tn, c = x.shape

    # validity mask for the (possibly ragged) trailing tile; OOB rows hold
    # unspecified data and are zeroed out here (N is a trace-time constant).
    row_ids = pl.program_id(0) * tn + lax.broadcasted_iota(jnp.int32, (tn, 1), 0)
    valid = row_ids < n_rows                                            # (TILE_N, 1)

    # numerically stable log-sum-exp along the class (lane) axis
    m = jnp.max(x, axis=-1, keepdims=True)                              # (TILE_N, 1)
    lse = m + jnp.log(jnp.sum(jnp.exp(x - m), axis=-1, keepdims=True))  # (TILE_N, 1)

    # pick x[i, y_i] with a one-hot compare (no logp materialization, no gather)
    cls_ids = lax.broadcasted_iota(jnp.int32, (tn, c), 1)
    onehot = cls_ids == labels                                          # (TILE_N, C)
    picked_x = jnp.sum(jnp.where(onehot, x, 0.0), axis=-1, keepdims=True)

    per_row = jnp.where(valid, w_i * (lse - picked_x), 0.0)  # w_i * (-log_softmax[y])
    w_valid = jnp.where(valid, w_i, 0.0)

    num_ref[0, 0] = jnp.sum(per_row)
    den_ref[0, 0] = jnp.sum(w_valid)


def ce_loss(predicted, labels, weight, *, max_tile_n=1024):
    """Weighted cross-entropy loss (mean reduction), Pallas TPU kernel.

    predicted: (N, C) float logits (any float dtype; kept native on the wire)
    labels:    (N,)   int class indices
    weight:    (C,)   float per-class weights
    """
    n, c = predicted.shape
    labels_i = labels.astype(jnp.int32)
    # cheap per-sample weight gather in the wrapper (length-N)
    w_i = weight.astype(jnp.float32)[labels_i]                          # (N,)

    # ---- tile selection: double-buffered logit tile <= ~16 MiB of VMEM ----
    itemsize = jnp.dtype(predicted.dtype).itemsize
    row_bytes = max(c * itemsize, 1)
    budget = 8 * 1024 * 1024
    tile_n = min(max_tile_n, max(16, budget // (2 * row_bytes)))
    tile_n = max(16, (tile_n // 16) * 16)            # 16-aligned (safe for bf16/f32)
    tile_n = min(tile_n, max(16, 16 * ((n + 15) // 16)))   # never larger than needed

    num_tiles = pl.cdiv(n, tile_n)                   # ragged last tile handled in-kernel

    kernel = functools.partial(_ce_loss_kernel, n_rows=n)

    num_parts, den_parts = pl.pallas_call(
        kernel,
        grid=(num_tiles,),
        in_specs=[
            pl.BlockSpec((tile_n, c), lambda i: (i, 0)),
            pl.BlockSpec((tile_n, 1), lambda i: (i, 0)),
            pl.BlockSpec((tile_n, 1), lambda i: (i, 0)),
        ],
        out_specs=[
            pl.BlockSpec((1, 1), lambda i: (i, 0), memory_space=pltpu.SMEM),
            pl.BlockSpec((1, 1), lambda i: (i, 0), memory_space=pltpu.SMEM),
        ],
        out_shape=[
            jax.ShapeDtypeStruct((num_tiles, 1), jnp.float32),
            jax.ShapeDtypeStruct((num_tiles, 1), jnp.float32),
        ],
        compiler_params=pltpu.CompilerParams(
            dimension_semantics=("parallel",),
            vmem_limit_bytes=32 * 1024 * 1024,
        ),
    )(predicted, labels_i.reshape(n, 1), w_i.reshape(n, 1))

    return jnp.sum(num_parts) / jnp.sum(den_parts)


def _ce_loss_ref(predicted, labels, weight):
    # pure-JAX reference matching torch.nn.CrossEntropyLoss(weight=w)
    logp = jax.nn.log_softmax(predicted.astype(jnp.float32), axis=-1)
    picked = jnp.take_along_axis(logp, labels[:, None], axis=-1)[:, 0]
    w_i = weight[labels]
    return jnp.sum(-picked * w_i) / jnp.sum(w_i)


if __name__ == "__main__":
    key = jax.random.PRNGKey(0)
    k_logits, k_labels = jax.random.split(key)

    N, C = 8, 4  # batch=8 samples, 4 classes
    predicted = jax.random.normal(k_logits, (N, C), dtype=jnp.float32)
    labels = jax.random.randint(k_labels, (N,), 0, C, dtype=jnp.int32)
    # deterministic per-class weights (weight_CE from the module __init__)
    weight_CE = jnp.array([1.0, 2.0, 0.5, 1.5], dtype=jnp.float32)

    loss = ce_loss(predicted, labels, weight_CE)
    loss = jax.block_until_ready(loss)

    ref = _ce_loss_ref(predicted, labels, weight_CE)
    assert jnp.allclose(loss, ref, rtol=1e-5, atol=1e-5), (loss, ref)

    # multi-tile, non-divisible batch (ragged last tile) with bf16 logits
    N2, C2 = 300, 16
    k2a, k2b = jax.random.split(jax.random.PRNGKey(1))
    pred2 = jax.random.normal(k2a, (N2, C2), dtype=jnp.bfloat16)
    lab2 = jax.random.randint(k2b, (N2,), 0, C2, dtype=jnp.int32)
    w2 = jnp.linspace(0.5, 2.0, C2, dtype=jnp.float32)
    loss2 = jax.block_until_ready(ce_loss(pred2, lab2, w2, max_tile_n=128))
    ref2 = _ce_loss_ref(pred2.astype(jnp.float32), lab2, w2)
    assert jnp.allclose(loss2, ref2, rtol=2e-2, atol=2e-2), (loss2, ref2)

    print("KERNEL_OK")
</pallas_src>

<mosaic_0001>
module attributes {stable_mosaic.version = 11 : i64} {
  func.func @_ce_loss_kernel(%arg0: i32, %arg1: memref<16x4xf32, #tpu.memory_space<vmem>>, %arg2: memref<16x1xi32, #tpu.memory_space<vmem>>, %arg3: memref<16x1xf32, #tpu.memory_space<vmem>>, %arg4: memref<1x1xf32, #tpu.memory_space<smem>>, %arg5: memref<1x1xf32, #tpu.memory_space<smem>>) attributes {dimension_semantics = [#tpu.dimension_semantics<parallel>], iteration_bounds = array<i64: 1>, scalar_prefetch = 0 : i64, scratch_operands = 0 : i64, tpu.core_type = #tpu.core_type<tc>, window_params = [{transform_indices = @transform_0, window_bounds = array<i64: 16, 4>}, {transform_indices = @transform_1, window_bounds = array<i64: 16, 1>}, {transform_indices = @transform_2, window_bounds = array<i64: 16, 1>}, {transform_indices = @transform_3, window_bounds = array<i64: 1, 1>}, {transform_indices = @transform_4, window_bounds = array<i64: 1, 1>}]} {
    %c0 = arith.constant 0 : index
    %c0_0 = arith.constant 0 : index
    %0 = vector.load %arg1[%c0, %c0_0] : memref<16x4xf32, #tpu.memory_space<vmem>>, vector<16x4xf32>
    %c0_1 = arith.constant 0 : index
    %c0_2 = arith.constant 0 : index
    %1 = vector.load %arg2[%c0_1, %c0_2] : memref<16x1xi32, #tpu.memory_space<vmem>>, vector<16x1xi32>
    %c0_3 = arith.constant 0 : index
    %c0_4 = arith.constant 0 : index
    %2 = vector.load %arg3[%c0_3, %c0_4] : memref<16x1xf32, #tpu.memory_space<vmem>>, vector<16x1xf32>
    %c16_i32 = arith.constant 16 : i32
    %3 = arith.muli %arg0, %c16_i32 : i32
    %4 = tpu.iota {dimensions = array<i32: 0>} : vector<16x1xi32>
    %5 = vector.broadcast %3 : i32 to vector<16x1xi32>
    %6 = arith.addi %5, %4 : vector<16x1xi32>
    %c8_i32 = arith.constant 8 : i32
    %7 = vector.broadcast %c8_i32 : i32 to vector<16x1xi32>
    %8 = arith.cmpi slt, %6, %7 : vector<16x1xi32>
    %cst = arith.constant dense<0xFF800000> : vector<16xf32>
    %9 = vector.multi_reduction <maximumf>, %0, %cst [1] : vector<16x4xf32> to vector<16xf32>
    %10 = vector.shape_cast %9 : vector<16xf32> to vector<16x1xf32>
    %11 = vector.broadcast %10 : vector<16x1xf32> to vector<16x4xf32>
    %12 = arith.subf %0, %11 : vector<16x4xf32>
    %13 = math.exp %12 : vector<16x4xf32>
    %cst_5 = arith.constant dense<0.000000e+00> : vector<16xf32>
    %14 = vector.multi_reduction <add>, %13, %cst_5 [1] : vector<16x4xf32> to vector<16xf32>
    %15 = vector.shape_cast %14 : vector<16xf32> to vector<16x1xf32>
    %16 = math.log %15 : vector<16x1xf32>
    %17 = arith.addf %10, %16 : vector<16x1xf32>
    %18 = tpu.iota {dimensions = array<i32: 1>} : vector<16x4xi32>
    %19 = vector.broadcast %1 : vector<16x1xi32> to vector<16x4xi32>
    %20 = arith.cmpi eq, %18, %19 : vector<16x4xi32>
    %cst_6 = arith.constant 0.000000e+00 : f32
    %21 = vector.broadcast %cst_6 : f32 to vector<16x4xf32>
    %22 = arith.select %20, %0, %21 : vector<16x4xi1>, vector<16x4xf32>
    %cst_7 = arith.constant dense<0.000000e+00> : vector<16xf32>
    %23 = vector.multi_reduction <add>, %22, %cst_7 [1] : vector<16x4xf32> to vector<16xf32>
    %24 = vector.shape_cast %23 : vector<16xf32> to vector<16x1xf32>
    %25 = arith.subf %17, %24 : vector<16x1xf32>
    %26 = arith.mulf %2, %25 : vector<16x1xf32>
    %cst_8 = arith.constant 0.000000e+00 : f32
    %27 = vector.broadcast %cst_8 : f32 to vector<16x1xf32>
    %28 = arith.select %8, %26, %27 : vector<16x1xi1>, vector<16x1xf32>
    %cst_9 = arith.constant 0.000000e+00 : f32
    %29 = vector.broadcast %cst_9 : f32 to vector<16x1xf32>
    %30 = arith.select %8, %2, %29 : vector<16x1xi1>, vector<16x1xf32>
    %31 = vector.shape_cast %28 : vector<16x1xf32> to vector<1x16x1xf32>
    %cst_10 = arith.constant dense<0.000000e+00> : vector<1xf32>
    %32 = vector.multi_reduction <add>, %31, %cst_10 [1, 2] : vector<1x16x1xf32> to vector<1xf32>
    %33 = vector.shape_cast %32 : vector<1xf32> to vector<1x1x1xf32>
    %34 = vector.extract %33[0, 0, 0] : f32 from vector<1x1x1xf32>
    %c0_11 = arith.constant 0 : index
    %c0_12 = arith.constant 0 : index
    %35 = memref.load %arg4[%c0_11, %c0_12] : memref<1x1xf32, #tpu.memory_space<smem>>
    memref.store %34, %arg4[%c0_11, %c0_12] : memref<1x1xf32, #tpu.memory_space<smem>>
    %36 = vector.shape_cast %30 : vector<16x1xf32> to vector<1x16x1xf32>
    %cst_13 = arith.constant dense<0.000000e+00> : vector<1xf32>
    %37 = vector.multi_reduction <add>, %36, %cst_13 [1, 2] : vector<1x16x1xf32> to vector<1xf32>
    %38 = vector.shape_cast %37 : vector<1xf32> to vector<1x1x1xf32>
    %39 = vector.extract %38[0, 0, 0] : f32 from vector<1x1x1xf32>
    %c0_14 = arith.constant 0 : index
    %c0_15 = arith.constant 0 : index
    %40 = memref.load %arg5[%c0_14, %c0_15] : memref<1x1xf32, #tpu.memory_space<smem>>
    memref.store %39, %arg5[%c0_14, %c0_15] : memref<1x1xf32, #tpu.memory_space<smem>>
    return
  }
  func.func @transform_0(%arg0: i32) -> (i32, i32) {
    %c0_i32 = arith.constant 0 : i32
    %c0_i32_0 = arith.constant 0 : i32
    return %arg0, %c0_i32 : i32, i32
  }
  func.func @transform_1(%arg0: i32) -> (i32, i32) {
    %c0_i32 = arith.constant 0 : i32
    %c0_i32_0 = arith.constant 0 : i32
    return %arg0, %c0_i32 : i32, i32
  }
  func.func @transform_2(%arg0: i32) -> (i32, i32) {
    %c0_i32 = arith.constant 0 : i32
    %c0_i32_0 = arith.constant 0 : i32
    return %arg0, %c0_i32 : i32, i32
  }
  func.func @transform_3(%arg0: i32) -> (i32, i32) {
    %c0_i32 = arith.constant 0 : i32
    %c0_i32_0 = arith.constant 0 : i32
    return %arg0, %c0_i32 : i32, i32
  }
  func.func @transform_4(%arg0: i32) -> (i32, i32) {
    %c0_i32 = arith.constant 0 : i32
    %c0_i32_0 = arith.constant 0 : i32
    return %arg0, %c0_i32 : i32, i32
  }
}

</mosaic_0001>

<llo_original>
// kernel: tpu_custom_call.1
$region0: #{tpu_custom_call.1}
  #allocation0 [shape = 'u32[]', space=smem, size = 0x4, offset = 0x4, fixed_abs, tag = 'smem constant byte address 0x4 - core index']
  #allocation1 [shape = 'u32[144,128]{1,0:T(1,128)}', space=vmem, size = 0x12000, scoped, tag = 'internal scratch']
  %s0 = inlined_call_operand.vmem [shape: f32[8,4], index: 0, kind: input, shape index: {}]
  %s1 = inlined_call_operand.vmem [shape: s32[8,1], index: 1, kind: input, shape index: {}]
  %s2 = inlined_call_operand.vmem [shape: f32[8,1], index: 2, kind: input, shape index: {}]
  %s3 = inlined_call_operand.hbm [shape: f32[1,1], index: 3, kind: output, shape index: {0}]
  %s4 = inlined_call_operand.hbm [shape: f32[1,1], index: 4, kind: output, shape index: {1}]
  %5 = xla_tuple %s3, %s4
  %s6 = sld [smem:[#allocation0]]
  $region30: #{tpu_custom_call.1} parent=0
    _
  %s8 = ssub.s32 1, %s6
  %s9 = scalar_select 0, %s8, %s6
  $region1: #{tpu_custom_call.1} parent=0
    #allocation2 [shape = 'u8[512]{0}', space=smem, size = 0x200, scoped, tag = 'output window, operand 0, single buffered']
    #allocation3 [shape = 's32[1]{0}', space=sflag, size = 0x4, scoped, tag = 'scoped memory for tpu_custom_call.1']
    #allocation4 [shape = 'u8[512]{0}', space=smem, size = 0x200, scoped, tag = 'output window, operand 1, single buffered']
    #allocation5 [shape = 's32[1]{0}', space=sflag, size = 0x4, scoped, tag = 'scoped memory for tpu_custom_call.1']
    %10 = vsyncpa [#allocation3], 0
    %11 = vsyncpa [#allocation5], 0
    // Predicated region
    $region2: #{tpu_custom_call.1} parent=1 // pred_check
      _
    $region3: #{tpu_custom_call.1} parent=1 // pred_check_branch
      %13 = sbr.rel (0) target = $region5
    $region4: #{tpu_custom_call.1} parent=1 // pred_region
      _
    $region5: #{tpu_custom_call.1} parent=1 // pred_fallthru
      _
    // Predicated region
    $region6: #{tpu_custom_call.1} parent=1 // pred_check
      _
    $region7: #{tpu_custom_call.1} parent=1 // pred_check_branch
      %15 = sbr.rel (0) target = $region9
    $region8: #{tpu_custom_call.1} parent=1 // pred_region
      _
    $region9: #{tpu_custom_call.1} parent=1 // pred_fallthru
      _
    // Predicated region
    $region10: #{tpu_custom_call.1} parent=1 // pred_check
      _
    $region11: #{tpu_custom_call.1} parent=1 // pred_check_branch
      %17 = sbr.rel (0) target = $region13
    $region12: #{tpu_custom_call.1} parent=1 // pred_region
      _
    $region13: #{tpu_custom_call.1} parent=1 // pred_fallthru
      _
    %v18 = vld [vmem:[%s0] sm:$0xff]
    %v19 = vld [vmem:[%s0 + $0x8] sm:$0xff]
    %v20 = vld [vmem:[%s1] sm:$0xff]
    %v21 = vld [vmem:[%s1 + $0x8] sm:$0xff]
    %v22 = vld [vmem:[%s2] sm:$0xff]
    %v23 = vld [vmem:[%s2 + $0x8] sm:$0xff]
    %s24 = smul.u32 0, 16
    %v25 = vlaneseq
    %v26 = vshrl.u32 %v25, 7
    %v27 = vadd.s32 %v26, 8
    %v28 = vstv %s24
    %v29 = vadd.s32 %v28, %v26
    %v30 = vadd.s32 %v28, %v27
    %vm31 = vcmp.lt.s32.totalorder %v29, 8
    %vm32 = vcmp.lt.s32.totalorder %v30, 8
    %vm33 = vcmask 31744
    %v34 = vsel %vm33, %v18, -inf
    %35 = vmax.xlane.f32.xlu0 %v34
    %v36 = vpop.xlane.xlu0 %35
    %v37 = vsel %vm33, %v19, -inf
    %38 = vmax.xlane.f32.xlu0 %v37
    %v39 = vpop.xlane.xlu0 %38
    %v40 = vsub.f32 %v18, %v36
    %v41 = vsub.f32 %v19, %v39
    %v42 = vmul.f32 %v40, 1.442695
    %v43 = vpow.pop %v42
    %v44 = vmul.f32 %v41, 1.442695
    %v45 = vpow.pop %v44
    %v46 = vsel %vm33, %v43, 0.0
    %47 = vadd.xlane.f32.xlu0 %v46
    %v48 = vpop.xlane.xlu0 %47
    %v49 = vsel %vm33, %v45, 0.0
    %50 = vadd.xlane.f32.xlu0 %v49
    %v51 = vpop.xlane.xlu0 %50
    %v52 = vlog2.pop %v48
    %v53 = vmul.f32 %v52, 0.6931472
    %v54 = vlog2.pop %v51
    %v55 = vmul.f32 %v54, 0.6931472
    %v56 = vadd.f32 %v36, %v53
    %v57 = vadd.f32 %v39, %v55
    %v58 = vlaneseq
    %v59 = vand.u32 %v58, 127
    %60 = vset.pattern.permute.xlu0 0
    %61 = vperm.xlu0 %60, %v20
    %v62 = vpop.permute.xlu0 %61
    %63 = vset.pattern.permute.xlu0 0
    %64 = vperm.xlu0 %63, %v21
    %v65 = vpop.permute.xlu0 %64
    %vm66 = vcmp.eq.s32.totalorder %v59, %v62
    %vm67 = vcmp.eq.s32.totalorder %v59, %v65
    %v68 = vsel %vm66, %v18, 0.0
    %v69 = vsel %vm67, %v19, 0.0
    %v70 = vsel %vm33, %v68, 0.0
    %71 = vadd.xlane.f32.xlu0 %v70
    %v72 = vpop.xlane.xlu0 %71
    %v73 = vsel %vm33, %v69, 0.0
    %74 = vadd.xlane.f32.xlu0 %v73
    %v75 = vpop.xlane.xlu0 %74
    %v76 = vsub.f32 %v56, %v72
    %v77 = vsub.f32 %v57, %v75
    %v78 = vmul.f32 %v22, %v76
    %v79 = vmul.f32 %v23, %v77
    %v80 = vsel %vm31, %v78, 0.0
    %v81 = vsel %vm32, %v79, 0.0
    %v82 = vsel %vm31, %v22, 0.0
    %v83 = vsel %vm32, %v23, 0.0
    %vm84 = vcmask 7168
    %v85 = vsel %vm84, %v80, 0.0
    %v86 = vsel %vm84, %v81, 0.0
    %v87 = vadd.f32 %v85, %v86
    %88 = vadd.xlane.f32.xlu0 %v87
    %v89 = vpop.xlane.xlu0 %88
    %v90 = vrot.slane %v89, 4
    %v91 = vadd.f32 %v89, %v90
    %v92 = vrot.slane %v91, 2
    %v93 = vadd.f32 %v91, %v92
    %v94 = vrot.slane %v93, 1
    %v95 = vadd.f32 %v93, %v94
    %s96 = vtos %v95
    %s97 = scalar_lea.smem [#allocation2], 0
    %98 = sst [smem:[%s97]] %s96
    %v99 = vsel %vm84, %v82, 0.0
    %v100 = vsel %vm84, %v83, 0.0
    %v101 = vadd.f32 %v99, %v100
    %102 = vadd.xlane.f32.xlu0 %v101
    %v103 = vpop.xlane.xlu0 %102
    %v104 = vrot.slane %v103, 4
    %v105 = vadd.f32 %v103, %v104
    %v106 = vrot.slane %v105, 2
    %v107 = vadd.f32 %v105, %v106
    %v108 = vrot.slane %v107, 1
    %v109 = vadd.f32 %v107, %v108
    %s110 = vtos %v109
    %s111 = scalar_lea.smem [#allocation4], 0
    %112 = sst [smem:[%s111]] %s110
    // Predicated region
    $region14: #{tpu_custom_call.1} parent=1 // pred_check
      _
    $region15: #{tpu_custom_call.1} parent=1 // pred_check_branch
      %114 = sbr.rel (0) target = $region17
    $region16: #{tpu_custom_call.1} parent=1 // pred_region
      %s116 = ssub.s32 16, 16
      %117 = vsyncadd [#allocation3], %s116
      %120 = dma.smem_to_hbm [#allocation2], 16, %s3, [#allocation3]
    $region17: #{tpu_custom_call.1} parent=1 // pred_fallthru
      _
    // Predicated region
    $region18: #{tpu_custom_call.1} parent=1 // pred_check
      _
    $region19: #{tpu_custom_call.1} parent=1 // pred_check_branch
      %122 = sbr.rel (0) target = $region21
    $region20: #{tpu_custom_call.1} parent=1 // pred_region
      %s124 = ssub.s32 16, 16
      %125 = vsyncadd [#allocation5], %s124
      %128 = dma.smem_to_hbm [#allocation4], 16, %s4, [#allocation5]
    $region21: #{tpu_custom_call.1} parent=1 // pred_fallthru
      _
    // Predicated region
    $region22: #{tpu_custom_call.1} parent=1 // pred_check
      _
    $region23: #{tpu_custom_call.1} parent=1 // pred_check_branch
      %130 = sbr.rel (0) target = $region25
    $region24: #{tpu_custom_call.1} parent=1 // pred_region
      %131 = dma.done [#allocation3], 16
    $region25: #{tpu_custom_call.1} parent=1 // pred_fallthru
      _
    // Predicated region
    $region26: #{tpu_custom_call.1} parent=1 // pred_check
      _
    $region27: #{tpu_custom_call.1} parent=1 // pred_check_branch
      %133 = sbr.rel (0) target = $region29
    $region28: #{tpu_custom_call.1} parent=1 // pred_region
      %134 = dma.done [#allocation5], 16
    $region29: #{tpu_custom_call.1} parent=1 // pred_fallthru
      _
    %135 = sfence
    %136 = vsyncpa [#allocation3], 1
    %137 = vsyncpa [#allocation5], 1

</llo_original>
